<compile_context>
chip_gen: v6e
topology: v6e:2x2x1
jax: 0.10.0
libtpu: 0.0.40
codegen_flags: <defaults>
</compile_context>

<pallas_src>
import functools

import jax
import jax.numpy as jnp
from jax.experimental import pallas as pl
from jax.experimental.pallas import tpu as pltpu


def _crms_norm_kernel(x_ref, o_ref, *, eps, d):
    x = x_ref[...].astype(jnp.float32)                       # (tile, D)
    row_sum = jnp.sum(x, axis=-1, keepdims=True)             # (tile, 1)  XLU
    sq_sum = jnp.sum(x * x, axis=-1, keepdims=True)          # (tile, 1)  VPU+XLU
    denom = (sq_sum + row_sum * row_sum) / jnp.float32(d + 1) + jnp.float32(eps)
    inv = jax.lax.rsqrt(denom)                                # EUP
    o_ref[...] = (x * inv).astype(o_ref.dtype)


def _round_up(n, m):
    return ((n + m - 1) // m) * m


def _vmem_capacity_bytes():
    """Physical VMEM capacity, with a conservative fallback (v7x = 64 MiB)."""
    try:
        info = pltpu.get_tpu_info()
        cap = getattr(info, "vmem_capacity_bytes", None)
        if cap:
            return int(cap)
    except Exception:
        pass
    return 64 * 1024 * 1024


def _num_tensorcores():
    """Best-effort TensorCore count per chip (v5e/v6e: 1, v7x: 2)."""
    try:
        info = pltpu.get_tpu_info()
        for attr in ("num_cores", "core_count", "num_tensorcores", "cores_per_chip"):
            v = getattr(info, attr, None)
            if v:
                return int(v)
    except Exception:
        pass
    try:
        dev = jax.devices()[0]
        for attr in ("num_cores", "core_count"):
            v = getattr(dev, attr, None)
            if v:
                return int(v)
    except Exception:
        pass
    return 1


def crms_norm(x, eps: float = 1e-8):
    """cRMSNorm over the last axis of x (any leading dims)."""
    orig_shape = x.shape
    d = orig_shape[-1]
    rows = 1
    for s in orig_shape[:-1]:
        rows *= s
    x2 = x.reshape(rows, d)

    itemsize = jnp.dtype(x.dtype).itemsize
    align = {4: 8, 2: 16, 1: 32}.get(itemsize, 8)   # sublane packing per dtype

    # --- VMEM accounting (dtype-aware) --------------------------------------
    # Per live grid step: 2 pipeline buffers x (in + out) blocks in the native
    # dtype, plus ~one f32 copy for the upcast when the input is sub-32-bit.
    upcast_extra = 4 if itemsize < 4 else 0
    bytes_per_row = d * (4 * itemsize + upcast_extra)

    vmem_cap = _vmem_capacity_bytes()
    max_vmem_limit = int(vmem_cap * 3 // 4)

    min_footprint = align * bytes_per_row
    if min_footprint > max_vmem_limit:
        # TODO(synk): split D across a second "arbitrary" grid axis
        # (accumulate/finalize two-pass) for feature widths this large.
        raise ValueError(
            f"crms_norm: feature dim {d} is too wide for a full-row VMEM tile "
            f"({min_footprint} bytes needed at the minimum {align}-row tile, "
            f"{max_vmem_limit} bytes of VMEM available).")

    # --- row-tile selection (bytes-based, not row-count-based) --------------
    budget = min(int(vmem_cap * 0.6), 48 * 1024 * 1024)
    tile = max(align, (budget // bytes_per_row) // align * align)

    # Cap per-input-block size at ~8 MiB: already well past the ~85%-of-HBM-
    # roofline regime, keeps per-step overhead negligible, leaves headroom.
    max_in_block = 8 * 1024 * 1024
    tile = min(tile, max(align, (max_in_block // (d * itemsize)) // align * align))

    # Shard across TensorCores (v7x has 2), but only if the resulting blocks
    # stay >= ~2 MiB; splitting below that just exposes DMA/step overhead.
    cores = _num_tensorcores()
    min_steps = max(2, 2 * cores)
    tile_steps = max(align, _round_up(pl.cdiv(rows, min_steps), align))
    if tile_steps * d * itemsize >= 2 * 1024 * 1024:
        tile = min(tile, tile_steps)

    # Single-block case: use the exact row count (full-dim block is always
    # legal, no alignment requirement, no padded tail).
    if tile >= rows:
        tile = rows

    grid = (pl.cdiv(rows, tile),)   # partial last block; OOB stores are masked

    needed = tile * bytes_per_row
    vmem_limit = int(min(max_vmem_limit, max(needed * 2, 32 * 1024 * 1024)))

    kernel = functools.partial(_crms_norm_kernel, eps=eps, d=d)

    out = pl.pallas_call(
        kernel,
        out_shape=jax.ShapeDtypeStruct((rows, d), x.dtype),
        grid_spec=pltpu.PrefetchScalarGridSpec(
            num_scalar_prefetch=0,
            grid=grid,
            in_specs=[pl.BlockSpec((tile, d), lambda i: (i, 0))],
            out_specs=pl.BlockSpec((tile, d), lambda i: (i, 0)),
        ),
        compiler_params=pltpu.CompilerParams(
            dimension_semantics=("parallel",),
            vmem_limit_bytes=vmem_limit,
        ),
    )(x2)

    return out.reshape(orig_shape)


def crms_norm_ref(x, eps: float = 1e-8):
    x32 = x.astype(jnp.float32)
    s = jnp.sum(x32, axis=-1, keepdims=True)
    sq = jnp.sum(x32 * x32, axis=-1, keepdims=True)
    return (x32 * jax.lax.rsqrt((sq + s * s) / (x.shape[-1] + 1) + eps)).astype(x.dtype)


if __name__ == "__main__":
    key = jax.random.PRNGKey(0)

    # (batch=2, seq=8, hidden=32), normalized over hidden (last axis).
    x = jax.random.normal(key, (2, 8, 32), dtype=jnp.float32)
    y = jax.block_until_ready(crms_norm(x, eps=1e-8))
    y_ref = crms_norm_ref(x, eps=1e-8)
    assert y.shape == x.shape and y.dtype == x.dtype
    assert jnp.max(jnp.abs(y - y_ref)) < 1e-5

    # Non-aligned rows (3*7=21) and non-128-multiple D (96): exercised via a
    # partial last block and a native-width (masked-store) feature axis —
    # no wrapper pads or slices anywhere.
    x2 = jax.random.normal(jax.random.PRNGKey(1), (3, 7, 96), dtype=jnp.float32)
    y2 = jax.block_until_ready(crms_norm(x2, eps=1e-8))
    y2_ref = crms_norm_ref(x2, eps=1e-8)
    assert y2.shape == x2.shape and y2.dtype == x2.dtype
    assert jnp.max(jnp.abs(y2 - y2_ref)) < 1e-5

    print("KERNEL_OK")
</pallas_src>

<mosaic_0001>
module attributes {stable_mosaic.version = 11 : i64} {
  func.func @_crms_norm_kernel(%arg0: i32, %arg1: memref<16x32xf32, #tpu.memory_space<vmem>>, %arg2: memref<16x32xf32, #tpu.memory_space<vmem>>) attributes {dimension_semantics = [#tpu.dimension_semantics<parallel>], iteration_bounds = array<i64: 1>, scalar_prefetch = 0 : i64, scratch_operands = 0 : i64, tpu.core_type = #tpu.core_type<tc>, window_params = [{transform_indices = @transform_0, window_bounds = array<i64: 16, 32>}, {transform_indices = @transform_1, window_bounds = array<i64: 16, 32>}]} {
    %c0 = arith.constant 0 : index
    %c0_0 = arith.constant 0 : index
    %0 = vector.load %arg1[%c0, %c0_0] : memref<16x32xf32, #tpu.memory_space<vmem>>, vector<16x32xf32>
    %cst = arith.constant dense<0.000000e+00> : vector<16xf32>
    %1 = vector.multi_reduction <add>, %0, %cst [1] : vector<16x32xf32> to vector<16xf32>
    %2 = vector.shape_cast %1 : vector<16xf32> to vector<16x1xf32>
    %3 = arith.mulf %0, %0 : vector<16x32xf32>
    %cst_1 = arith.constant dense<0.000000e+00> : vector<16xf32>
    %4 = vector.multi_reduction <add>, %3, %cst_1 [1] : vector<16x32xf32> to vector<16xf32>
    %5 = vector.shape_cast %4 : vector<16xf32> to vector<16x1xf32>
    %6 = arith.mulf %2, %2 : vector<16x1xf32>
    %7 = arith.addf %5, %6 : vector<16x1xf32>
    %cst_2 = arith.constant 3.300000e+01 : f32
    %8 = vector.broadcast %cst_2 : f32 to vector<16x1xf32>
    %9 = arith.divf %7, %8 : vector<16x1xf32>
    %cst_3 = arith.constant 9.99999993E-9 : f32
    %10 = vector.broadcast %cst_3 : f32 to vector<16x1xf32>
    %11 = arith.addf %9, %10 : vector<16x1xf32>
    %12 = math.rsqrt %11 : vector<16x1xf32>
    %13 = vector.broadcast %12 : vector<16x1xf32> to vector<16x32xf32>
    %14 = arith.mulf %0, %13 : vector<16x32xf32>
    %c0_4 = arith.constant 0 : index
    %c0_5 = arith.constant 0 : index
    %15 = vector.load %arg2[%c0_4, %c0_5] : memref<16x32xf32, #tpu.memory_space<vmem>>, vector<16x32xf32>
    tpu.vector_store %arg2[%c0_4, %c0_5], %14 {strides = array<i32>} : memref<16x32xf32, #tpu.memory_space<vmem>>, vector<16x32xf32>,
    return
  }
  func.func @transform_0(%arg0: i32) -> (i32, i32) {
    %c0_i32 = arith.constant 0 : i32
    %c0_i32_0 = arith.constant 0 : i32
    return %arg0, %c0_i32 : i32, i32
  }
  func.func @transform_1(%arg0: i32) -> (i32, i32) {
    %c0_i32 = arith.constant 0 : i32
    %c0_i32_0 = arith.constant 0 : i32
    return %arg0, %c0_i32 : i32, i32
  }
}

</mosaic_0001>

<llo_original>
// kernel: tpu_custom_call.1
$region0: #{tpu_custom_call.1}
  #allocation0 [shape = 'u32[]', space=smem, size = 0x4, offset = 0x4, fixed_abs, tag = 'smem constant byte address 0x4 - core index']
  #allocation1 [shape = 'u32[144,128]{1,0:T(1,128)}', space=vmem, size = 0x12000, scoped, tag = 'internal scratch']
  %s0 = inlined_call_operand.hbm [shape: f32[16,32], index: 0, kind: input, shape index: {}]
  %s1 = inlined_call_operand.hbm [shape: f32[16,32], index: 1, kind: output, shape index: {}]
  %s2 = sld [smem:[#allocation0]]
  $region18: #{tpu_custom_call.1} parent=0
    _
  %s4 = ssub.s32 1, %s2
  %s5 = scalar_select 0, %s4, %s2
  $region1: #{tpu_custom_call.1} parent=0
    #allocation2 [shape = 'u8[8192]{0}', space=vmem, size = 0x2000, scoped, tag = 'input window, operand 0, single buffered']
    #allocation3 [shape = 's32[1]{0}', space=sflag, size = 0x4, scoped, tag = 'scoped memory for tpu_custom_call.1']
    #allocation4 [shape = 's32[1]{0}', space=sflag, size = 0x4, scoped, tag = 'scoped memory for tpu_custom_call.1']
    #allocation5 [shape = 'u8[8192]{0}', space=vmem, size = 0x2000, scoped, tag = 'output window, operand 0, single buffered']
    %6 = vsyncpa [#allocation3], 0
    %7 = vsyncpa [#allocation4], 0
    // Predicated region
    $region2: #{tpu_custom_call.1} parent=1 // pred_check
      _
    $region3: #{tpu_custom_call.1} parent=1 // pred_check_branch
      %9 = sbr.rel (0) target = $region5
    $region4: #{tpu_custom_call.1} parent=1 // pred_region
      %s11 = ssub.s32 256, 256
      %12 = vsyncadd [#allocation3], %s11
      %s13 = sshll.u32 [#allocation2], 4
      %s14 = int_to_ptr.vmem [resolvable:$true] %s13
      %19 = dma.hbm_to_vmem [thread:$0]  %s0, 256, %s14, [#allocation3], 128, 128, 8
    $region5: #{tpu_custom_call.1} parent=1 // pred_fallthru
      _
    // Predicated region
    $region6: #{tpu_custom_call.1} parent=1 // pred_check
      _
    $region7: #{tpu_custom_call.1} parent=1 // pred_check_branch
      %21 = sbr.rel (0) target = $region9
    $region8: #{tpu_custom_call.1} parent=1 // pred_region
      %22 = dma.done [#allocation3], 256
    $region9: #{tpu_custom_call.1} parent=1 // pred_fallthru
      _
    %v23 = vld [vmem:[#allocation2] sm:$0xff]
    %v24 = vld [vmem:[#allocation2 + $0x8] sm:$0xff]
    %vm25 = vcmask 261120
    %v26 = vsel %vm25, %v23, 0.0
    %27 = vadd.xlane.f32.xlu0 %v26
    %v28 = vpop.xlane.xlu0 %27
    %v29 = vsel %vm25, %v24, 0.0
    %30 = vadd.xlane.f32.xlu0 %v29
    %v31 = vpop.xlane.xlu0 %30
    %v32 = vmul.f32 %v23, %v23
    %v33 = vmul.f32 %v24, %v24
    %v34 = vsel %vm25, %v32, 0.0
    %35 = vadd.xlane.f32.xlu0 %v34
    %v36 = vpop.xlane.xlu0 %35
    %v37 = vsel %vm25, %v33, 0.0
    %38 = vadd.xlane.f32.xlu0 %v37
    %v39 = vpop.xlane.xlu0 %38
    %v40 = vmul.f32 %v28, %v28
    %v41 = vmul.f32 %v31, %v31
    %v42 = vadd.f32 %v36, %v40
    %v43 = vadd.f32 %v39, %v41
    %v44 = vrcp.pop 33.0
    %v45 = vmul.f32 %v42, %v44
    %v46 = vmul.f32 %v43, %v44
    %v47 = vadd.f32 %v45, 1e-08
    %v48 = vadd.f32 %v46, 1e-08
    %v49 = vrsqrt.pop %v47
    %v50 = vrsqrt.pop %v48
    %v51 = vmul.f32 %v23, %v49
    %v52 = vmul.f32 %v24, %v50
    %53 = vst.msk [vmem:[#allocation5] sm:$0xff] %vm25, %v51
    %54 = vst.msk [vmem:[#allocation5 + $0x8] sm:$0xff] %vm25, %v52
    // Predicated region
    $region10: #{tpu_custom_call.1} parent=1 // pred_check
      _
    $region11: #{tpu_custom_call.1} parent=1 // pred_check_branch
      %56 = sbr.rel (0) target = $region13
    $region12: #{tpu_custom_call.1} parent=1 // pred_region
      %s58 = ssub.s32 256, 256
      %59 = vsyncadd [#allocation4], %s58
      %s60 = sshll.u32 [#allocation5], 4
      %s61 = int_to_ptr.vmem [resolvable:$true] %s60
      %66 = dma.vmem_to_hbm [thread:$0]  %s61, 256, %s1, [#allocation4], 128, 128, 8
    $region13: #{tpu_custom_call.1} parent=1 // pred_fallthru
      _
    // Predicated region
    $region14: #{tpu_custom_call.1} parent=1 // pred_check
      _
    $region15: #{tpu_custom_call.1} parent=1 // pred_check_branch
      %68 = sbr.rel (0) target = $region17
    $region16: #{tpu_custom_call.1} parent=1 // pred_region
      %69 = dma.done [#allocation4], 256
    $region17: #{tpu_custom_call.1} parent=1 // pred_fallthru
      _
    %70 = vsyncpa [#allocation3], 1
    %71 = vsyncpa [#allocation4], 1

</llo_original>
